<compile_context>
chip_gen: v5e
topology: v5e:2x2
jax: 0.10.0
libtpu: 0.0.40
codegen_flags: <defaults>
</compile_context>

<pallas_src>
import functools
import operator

import jax
import jax.numpy as jnp
from jax.experimental import pallas as pl
from jax.experimental.pallas import tpu as pltpu


def _stack_dma_kernel(*refs):
    """Per grid step: DMA one contiguous chunk of every candidate into its
    slot of the stacked output, entirely HBM->HBM (no VMEM round-trip)."""
    n = len(refs) - 2
    cand_refs = refs[:n]
    out_ref = refs[n]
    sem = refs[n + 1]

    chunk = pl.program_id(0)
    copies = []
    for j in range(n):
        cp = pltpu.make_async_copy(cand_refs[j].at[chunk],
                                   out_ref.at[j, chunk],
                                   sem.at[j])
        cp.start()
        copies.append(cp)
    for cp in copies:
        cp.wait()


def _pick_num_chunks(total_elems, itemsize, min_chunk_bytes=1024):
    """Prefer >=2 chunks (ideally 8) so v7x's two TensorCores both get work on
    this bandwidth-bound copy.  Chunks must divide the flattened element count
    so every DMA has a static size, and should not be absurdly small."""
    for n_chunks in (8, 4, 2):
        if total_elems % n_chunks == 0:
            if (total_elems // n_chunks) * itemsize >= min_chunk_bytes:
                return n_chunks
    return 1


def input_choice_forward(candidate_inputs):
    """Stack N same-shaped candidates along a new leading axis with Pallas."""
    n = len(candidate_inputs)
    assert n >= 1
    cands = [jnp.asarray(c) for c in candidate_inputs]
    orig_shape = tuple(cands[0].shape)
    for c in cands:
        if tuple(c.shape) != orig_shape:
            raise ValueError(
                f"InputChoice candidates must share a shape: "
                f"{tuple(c.shape)} vs {orig_shape}")

    # Promote like jnp.stack; cast only the mismatched candidates.
    dtype = jnp.result_type(*cands)
    cands = [c if c.dtype == dtype else c.astype(dtype) for c in cands]

    total = max(int(functools.reduce(operator.mul, orig_shape, 1)), 1)
    itemsize = jnp.dtype(dtype).itemsize

    n_chunks = _pick_num_chunks(total, itemsize)
    chunk_len = total // n_chunks

    # Free metadata reshape of contiguous arrays to a flat chunked view.
    cands_flat = [c.reshape(n_chunks, chunk_len) for c in cands]

    out = pl.pallas_call(
        _stack_dma_kernel,
        out_shape=jax.ShapeDtypeStruct((n, n_chunks, chunk_len), dtype),
        grid=(n_chunks,),
        in_specs=[pl.BlockSpec(memory_space=pl.ANY) for _ in range(n)],
        out_specs=pl.BlockSpec(memory_space=pl.ANY),
        scratch_shapes=[pltpu.SemaphoreType.DMA((n,))],
        compiler_params=pltpu.CompilerParams(
            dimension_semantics=("parallel",),
        ),
        cost_estimate=pl.CostEstimate(
            flops=0, transcendentals=0,
            bytes_accessed=2 * n * total * itemsize),
    )(*cands_flat)

    # TODO(synk): n_chosen / reduction / mask semantics only apply after NAS
    # mutation; the module's placeholder forward is exactly this stack.
    return out.reshape((n,) + orig_shape)


if __name__ == "__main__":
    key = jax.random.PRNGKey(0)

    # Main check: 3 candidates of shape (2, 4, 16, 16) -> (3, 2, 4, 16, 16).
    n_candidates = 3
    B, C, H, W = 2, 4, 16, 16
    keys = jax.random.split(key, n_candidates)
    candidates = [
        jax.random.normal(k, (B, C, H, W), dtype=jnp.float32) for k in keys
    ]
    out = jax.block_until_ready(input_choice_forward(candidates))
    ref = jnp.stack(candidates, axis=0)
    assert out.shape == (n_candidates, B, C, H, W), out.shape
    assert out.dtype == jnp.float32, out.dtype
    assert bool(jnp.array_equal(out, ref))

    # Fallback path: element count with no small even divisor -> single-chunk grid.
    odd_keys = jax.random.split(jax.random.PRNGKey(1), 2)
    odd_candidates = [
        jax.random.normal(k, (3, 5, 7), dtype=jnp.float32) for k in odd_keys
    ]
    odd_out = jax.block_until_ready(input_choice_forward(odd_candidates))
    assert odd_out.shape == (2, 3, 5, 7), odd_out.shape
    assert bool(jnp.array_equal(odd_out, jnp.stack(odd_candidates, axis=0)))

    print("KERNEL_OK")
</pallas_src>

<mosaic_0001>
module attributes {stable_mosaic.version = 11 : i64} {
  func.func @_stack_dma_kernel(%arg0: i32, %arg1: memref<8x256xf32, #tpu.memory_space<any>>, %arg2: memref<8x256xf32, #tpu.memory_space<any>>, %arg3: memref<8x256xf32, #tpu.memory_space<any>>, %arg4: memref<3x8x256xf32, #tpu.memory_space<any>>, %arg5: memref<3x!tpu.dma_semaphore, #tpu.memory_space<semaphore_mem>>) attributes {dimension_semantics = [#tpu.dimension_semantics<parallel>], iteration_bounds = array<i64: 8>, scalar_prefetch = 0 : i64, scratch_operands = 1 : i64, tpu.core_type = #tpu.core_type<tc>, window_params = [{}, {}, {}, {}]} {
    %c0_i32 = arith.constant 0 : i32
    %c0_i32_0 = arith.constant 0 : i32
    %c0_i32_1 = arith.constant 0 : i32
    %0 = tpu.memref_slice %arg1[%arg0, %c0_i32_1] : memref<8x256xf32, #tpu.memory_space<any>> -> memref<1x256xf32, #tpu.memory_space<any>>
    %1 = tpu.memref_squeeze %0 : memref<1x256xf32, #tpu.memory_space<any>> -> memref<256xf32, #tpu.memory_space<any>>
    %c0_i32_2 = arith.constant 0 : i32
    %2 = tpu.memref_slice %arg4[%c0_i32, %arg0, %c0_i32_2] : memref<3x8x256xf32, #tpu.memory_space<any>> -> memref<1x1x256xf32, #tpu.memory_space<any>>
    %3 = tpu.memref_squeeze %2 : memref<1x1x256xf32, #tpu.memory_space<any>> -> memref<256xf32, #tpu.memory_space<any>>
    %4 = tpu.memref_slice %arg5[%c0_i32_0] : memref<3x!tpu.dma_semaphore, #tpu.memory_space<semaphore_mem>> -> memref<1x!tpu.dma_semaphore, #tpu.memory_space<semaphore_mem>>
    %5 = tpu.memref_squeeze %4 : memref<1x!tpu.dma_semaphore, #tpu.memory_space<semaphore_mem>> -> memref<!tpu.dma_semaphore, #tpu.memory_space<semaphore_mem>>
    tpu.enqueue_dma source(%1 : memref<256xf32, #tpu.memory_space<any>>) target(%3 : memref<256xf32, #tpu.memory_space<any>>) target_semaphore(%5 : memref<!tpu.dma_semaphore, #tpu.memory_space<semaphore_mem>>)
    %c1_i32 = arith.constant 1 : i32
    %c1_i32_3 = arith.constant 1 : i32
    %c0_i32_4 = arith.constant 0 : i32
    %6 = tpu.memref_slice %arg2[%arg0, %c0_i32_4] : memref<8x256xf32, #tpu.memory_space<any>> -> memref<1x256xf32, #tpu.memory_space<any>>
    %7 = tpu.memref_squeeze %6 : memref<1x256xf32, #tpu.memory_space<any>> -> memref<256xf32, #tpu.memory_space<any>>
    %c0_i32_5 = arith.constant 0 : i32
    %8 = tpu.memref_slice %arg4[%c1_i32, %arg0, %c0_i32_5] : memref<3x8x256xf32, #tpu.memory_space<any>> -> memref<1x1x256xf32, #tpu.memory_space<any>>
    %9 = tpu.memref_squeeze %8 : memref<1x1x256xf32, #tpu.memory_space<any>> -> memref<256xf32, #tpu.memory_space<any>>
    %10 = tpu.memref_slice %arg5[%c1_i32_3] : memref<3x!tpu.dma_semaphore, #tpu.memory_space<semaphore_mem>> -> memref<1x!tpu.dma_semaphore, #tpu.memory_space<semaphore_mem>>
    %11 = tpu.memref_squeeze %10 : memref<1x!tpu.dma_semaphore, #tpu.memory_space<semaphore_mem>> -> memref<!tpu.dma_semaphore, #tpu.memory_space<semaphore_mem>>
    tpu.enqueue_dma source(%7 : memref<256xf32, #tpu.memory_space<any>>) target(%9 : memref<256xf32, #tpu.memory_space<any>>) target_semaphore(%11 : memref<!tpu.dma_semaphore, #tpu.memory_space<semaphore_mem>>)
    %c2_i32 = arith.constant 2 : i32
    %c2_i32_6 = arith.constant 2 : i32
    %c0_i32_7 = arith.constant 0 : i32
    %12 = tpu.memref_slice %arg3[%arg0, %c0_i32_7] : memref<8x256xf32, #tpu.memory_space<any>> -> memref<1x256xf32, #tpu.memory_space<any>>
    %13 = tpu.memref_squeeze %12 : memref<1x256xf32, #tpu.memory_space<any>> -> memref<256xf32, #tpu.memory_space<any>>
    %c0_i32_8 = arith.constant 0 : i32
    %14 = tpu.memref_slice %arg4[%c2_i32, %arg0, %c0_i32_8] : memref<3x8x256xf32, #tpu.memory_space<any>> -> memref<1x1x256xf32, #tpu.memory_space<any>>
    %15 = tpu.memref_squeeze %14 : memref<1x1x256xf32, #tpu.memory_space<any>> -> memref<256xf32, #tpu.memory_space<any>>
    %16 = tpu.memref_slice %arg5[%c2_i32_6] : memref<3x!tpu.dma_semaphore, #tpu.memory_space<semaphore_mem>> -> memref<1x!tpu.dma_semaphore, #tpu.memory_space<semaphore_mem>>
    %17 = tpu.memref_squeeze %16 : memref<1x!tpu.dma_semaphore, #tpu.memory_space<semaphore_mem>> -> memref<!tpu.dma_semaphore, #tpu.memory_space<semaphore_mem>>
    tpu.enqueue_dma source(%13 : memref<256xf32, #tpu.memory_space<any>>) target(%15 : memref<256xf32, #tpu.memory_space<any>>) target_semaphore(%17 : memref<!tpu.dma_semaphore, #tpu.memory_space<semaphore_mem>>)
    %c0_i32_9 = arith.constant 0 : i32
    %c0_i32_10 = arith.constant 0 : i32
    %c0_i32_11 = arith.constant 0 : i32
    %18 = tpu.memref_slice %arg1[%arg0, %c0_i32_11] : memref<8x256xf32, #tpu.memory_space<any>> -> memref<1x256xf32, #tpu.memory_space<any>>
    %19 = tpu.memref_squeeze %18 : memref<1x256xf32, #tpu.memory_space<any>> -> memref<256xf32, #tpu.memory_space<any>>
    %c0_i32_12 = arith.constant 0 : i32
    %20 = tpu.memref_slice %arg4[%c0_i32_9, %arg0, %c0_i32_12] : memref<3x8x256xf32, #tpu.memory_space<any>> -> memref<1x1x256xf32, #tpu.memory_space<any>>
    %21 = tpu.memref_squeeze %20 : memref<1x1x256xf32, #tpu.memory_space<any>> -> memref<256xf32, #tpu.memory_space<any>>
    %22 = tpu.memref_slice %arg5[%c0_i32_10] : memref<3x!tpu.dma_semaphore, #tpu.memory_space<semaphore_mem>> -> memref<1x!tpu.dma_semaphore, #tpu.memory_space<semaphore_mem>>
    %23 = tpu.memref_squeeze %22 : memref<1x!tpu.dma_semaphore, #tpu.memory_space<semaphore_mem>> -> memref<!tpu.dma_semaphore, #tpu.memory_space<semaphore_mem>>
    tpu.wait_dma2 semaphore(%23 : memref<!tpu.dma_semaphore, #tpu.memory_space<semaphore_mem>>) src(%19 : memref<256xf32, #tpu.memory_space<any>>) dst(%21 : memref<256xf32, #tpu.memory_space<any>>)
    %c1_i32_13 = arith.constant 1 : i32
    %c1_i32_14 = arith.constant 1 : i32
    %c0_i32_15 = arith.constant 0 : i32
    %24 = tpu.memref_slice %arg2[%arg0, %c0_i32_15] : memref<8x256xf32, #tpu.memory_space<any>> -> memref<1x256xf32, #tpu.memory_space<any>>
    %25 = tpu.memref_squeeze %24 : memref<1x256xf32, #tpu.memory_space<any>> -> memref<256xf32, #tpu.memory_space<any>>
    %c0_i32_16 = arith.constant 0 : i32
    %26 = tpu.memref_slice %arg4[%c1_i32_13, %arg0, %c0_i32_16] : memref<3x8x256xf32, #tpu.memory_space<any>> -> memref<1x1x256xf32, #tpu.memory_space<any>>
    %27 = tpu.memref_squeeze %26 : memref<1x1x256xf32, #tpu.memory_space<any>> -> memref<256xf32, #tpu.memory_space<any>>
    %28 = tpu.memref_slice %arg5[%c1_i32_14] : memref<3x!tpu.dma_semaphore, #tpu.memory_space<semaphore_mem>> -> memref<1x!tpu.dma_semaphore, #tpu.memory_space<semaphore_mem>>
    %29 = tpu.memref_squeeze %28 : memref<1x!tpu.dma_semaphore, #tpu.memory_space<semaphore_mem>> -> memref<!tpu.dma_semaphore, #tpu.memory_space<semaphore_mem>>
    tpu.wait_dma2 semaphore(%29 : memref<!tpu.dma_semaphore, #tpu.memory_space<semaphore_mem>>) src(%25 : memref<256xf32, #tpu.memory_space<any>>) dst(%27 : memref<256xf32, #tpu.memory_space<any>>)
    %c2_i32_17 = arith.constant 2 : i32
    %c2_i32_18 = arith.constant 2 : i32
    %c0_i32_19 = arith.constant 0 : i32
    %30 = tpu.memref_slice %arg3[%arg0, %c0_i32_19] : memref<8x256xf32, #tpu.memory_space<any>> -> memref<1x256xf32, #tpu.memory_space<any>>
    %31 = tpu.memref_squeeze %30 : memref<1x256xf32, #tpu.memory_space<any>> -> memref<256xf32, #tpu.memory_space<any>>
    %c0_i32_20 = arith.constant 0 : i32
    %32 = tpu.memref_slice %arg4[%c2_i32_17, %arg0, %c0_i32_20] : memref<3x8x256xf32, #tpu.memory_space<any>> -> memref<1x1x256xf32, #tpu.memory_space<any>>
    %33 = tpu.memref_squeeze %32 : memref<1x1x256xf32, #tpu.memory_space<any>> -> memref<256xf32, #tpu.memory_space<any>>
    %34 = tpu.memref_slice %arg5[%c2_i32_18] : memref<3x!tpu.dma_semaphore, #tpu.memory_space<semaphore_mem>> -> memref<1x!tpu.dma_semaphore, #tpu.memory_space<semaphore_mem>>
    %35 = tpu.memref_squeeze %34 : memref<1x!tpu.dma_semaphore, #tpu.memory_space<semaphore_mem>> -> memref<!tpu.dma_semaphore, #tpu.memory_space<semaphore_mem>>
    tpu.wait_dma2 semaphore(%35 : memref<!tpu.dma_semaphore, #tpu.memory_space<semaphore_mem>>) src(%31 : memref<256xf32, #tpu.memory_space<any>>) dst(%33 : memref<256xf32, #tpu.memory_space<any>>)
    return
  }
}

</mosaic_0001>

<llo_original>
// kernel: tpu_custom_call.1
$region0: #{tpu_custom_call.1}
  #allocation0 [shape = 'u32[]', space=smem, size = 0x4, offset = 0x4, fixed_abs, tag = 'smem constant byte address 0x4 - core index']
  #allocation1 [shape = 'u32[72,128]{1,0:T(1,128)}', space=vmem, size = 0x9000, scoped, tag = 'internal scratch']
  #allocation2 [shape = 's32[3]{0}', space=sflag, size = 0xc, scoped, tag = 'scratch operand']
  #allocation3 [shape = 's32[]', space=sflag, size = 0x4, offset = 0, fixed_abs, tag = 'sflag constant byte address 0x0 - dummy sync flag']
  #allocation5 [shape = 's32[]', space=sflag, size = 0x4, offset = 0, fixed_abs, tag = 'sflag constant byte address 0x0 - dummy sync flag']
  #allocation7 [shape = 's32[]', space=sflag, size = 0x4, offset = 0, fixed_abs, tag = 'sflag constant byte address 0x0 - dummy sync flag']
  %s0 = inlined_call_operand.hbm [shape: f32[8,256], index: 0, kind: input, shape index: {}]
  %s1 = inlined_call_operand.hbm [shape: f32[8,256], index: 1, kind: input, shape index: {}]
  %s2 = inlined_call_operand.hbm [shape: f32[8,256], index: 2, kind: input, shape index: {}]
  %s3 = inlined_call_operand.hbm [shape: f32[3,8,256], index: 3, kind: output, shape index: {}]
  %s4 = sld [smem:[#allocation0]]
  $region9: #{tpu_custom_call.1} parent=0
    _
  %s6 = ssub.s32 1, %s4
  %s7 = scalar_select 0, %s6, %s4
  loop: start=0, step=1, limit=8
  $region2: #{tpu_custom_call.1} parent=0 // loop_pre_header
    _
  $region3: #{tpu_custom_call.1} parent=0 // loop_header
    %s9 = sphi 0, %s13
    %p10 = scmp.ge.s32.totalorder %s9, 8
  $region4: #{tpu_custom_call.1} parent=0 // loop_header_branch
    %12 = sbr.rel (%p10) target = $region8
  $region5: #{tpu_custom_call.1} parent=0 // loop_body
    #allocation4 [shape = 'u32[3]{0}', space=smem, size = 0xc, scoped, tag = 'DMA stride descriptor']
    #allocation6 [shape = 'u32[3]{0}', space=smem, size = 0xc, scoped, tag = 'DMA stride descriptor']
    #allocation8 [shape = 'u32[3]{0}', space=smem, size = 0xc, scoped, tag = 'DMA stride descriptor']
    %s14 = sadd.s32 %s9, 1
    %s15 = sshrl.u32 %s9, 3
    %s16 = sand.u32 %s9, 7
    %s17 = smul.u32 %s15, 16
    %s18 = sadd.s32 %s16, %s17
    %s19 = scalar_lea.hbm %s0, %s18
    %s20 = scalar_lea.hbm %s3, %s18
    %s22 = sshll.u32 1, 14
    %s23 = sxor.u32 4294967295, %s22
    %s25 = sshll.u32 %s19, 4
    %s26 = int_to_ptr.hbm [resolvable:$true] %s25
    %s27 = sshll.u32 %s20, 4
    %s28 = int_to_ptr.hbm [resolvable:$true] %s27
    %32 = sst [smem:[#allocation4]] 128
    %s33 = scalar_lea.smem [#allocation4], 1
    %34 = sst [smem:[%s33]] 128
    %s35 = scalar_lea.smem [#allocation4], 2
    %36 = sst [smem:[%s35]] 1
    %38 = dma.general %s26, 32, %s28, [#allocation2], [#allocation3], [#allocation4], 0, 0
    %s39 = scalar_lea.hbm %s1, %s18
    %s40 = sadd.s32 %s18, 16
    %s41 = scalar_lea.hbm %s3, %s40
    %s42 = scalar_lea.sflag [#allocation2], 1
    %s44 = sshll.u32 1, 14
    %s45 = sxor.u32 4294967295, %s44
    %s47 = sshll.u32 %s39, 4
    %s48 = int_to_ptr.hbm [resolvable:$true] %s47
    %s49 = sshll.u32 %s41, 4
    %s50 = int_to_ptr.hbm [resolvable:$true] %s49
    %54 = sst [smem:[#allocation6]] 128
    %s55 = scalar_lea.smem [#allocation6], 1
    %56 = sst [smem:[%s55]] 128
    %s57 = scalar_lea.smem [#allocation6], 2
    %58 = sst [smem:[%s57]] 1
    %60 = dma.general %s48, 32, %s50, %s42, [#allocation5], [#allocation6], 0, 0
    %s61 = scalar_lea.hbm %s2, %s18
    %s62 = sadd.s32 %s18, 32
    %s63 = scalar_lea.hbm %s3, %s62
    %s64 = scalar_lea.sflag [#allocation2], 2
    %s66 = sshll.u32 1, 14
    %s67 = sxor.u32 4294967295, %s66
    %s69 = sshll.u32 %s61, 4
    %s70 = int_to_ptr.hbm [resolvable:$true] %s69
    %s71 = sshll.u32 %s63, 4
    %s72 = int_to_ptr.hbm [resolvable:$true] %s71
    %76 = sst [smem:[#allocation8]] 128
    %s77 = scalar_lea.smem [#allocation8], 1
    %78 = sst [smem:[%s77]] 128
    %s79 = scalar_lea.smem [#allocation8], 2
    %80 = sst [smem:[%s79]] 1
    %82 = dma.general %s70, 32, %s72, %s64, [#allocation7], [#allocation8], 0, 0
    %84 = dma.done [#allocation2], 32
    %86 = dma.done %s42, 32
    %88 = dma.done %s64, 32
  $region6: #{tpu_custom_call.1} parent=0 // loop_footer
    %s13 = sadd.s32 1, %s9
  $region7: #{tpu_custom_call.1} parent=0 // loop_footer_branch
    %8 = sbr.rel target = $region3
  $region8: #{tpu_custom_call.1} parent=0 // loop_exit
    _
  %89 = vsyncmov [#allocation2]
  %s90 = vpop.sfrf %89
  %p91 = scmp.eq.s32.totalorder %s90, 0
  %p92 = pneg %p91
  %94 = shalt.err (%p92)
  %s95 = scalar_lea.sflag [#allocation2], 1
  %96 = vsyncmov %s95
  %s97 = vpop.sfrf %96
  %p98 = scmp.eq.s32.totalorder %s97, 0
  %p99 = pneg %p98
  %101 = shalt.err (%p99)
  %s102 = scalar_lea.sflag [#allocation2], 2
  %103 = vsyncmov %s102
  %s104 = vpop.sfrf %103
  %p105 = scmp.eq.s32.totalorder %s104, 0
  %p106 = pneg %p105
  %108 = shalt.err (%p106)

</llo_original>
